<compile_context>
chip_gen: v7x
topology: tpu7x:2x2x1
jax: 0.10.0
libtpu: 0.0.40
codegen_flags: <defaults>
</compile_context>

<pallas_src>
import functools

import jax
import jax.numpy as jnp
from jax.experimental import pallas as pl
from jax.experimental.pallas import tpu as pltpu

LN_EPS = 1e-5  # torch nn.LayerNorm default eps


def _round_up(x, m):
    return ((x + m - 1) // m) * m


def mlp_actor_critic_kernel(x_ref, w_enc_ref, w0_ref, w1_ref, wl_ref, vec_ref,
                            out_ref, *, action_dim, out_tail):
    feat = w_enc_ref.shape[1]
    two_h0 = w0_ref.shape[1]
    two_h1 = w1_ref.shape[1]
    h1 = two_h1 // 2
    l_pad = wl_ref.shape[1]

    x = x_ref[...]                                   # (tile_n, d_pad) bf16

    # small vectors packed in one slab (static slices, hoisted once)
    b_enc = vec_ref[0:1, :feat]
    ln_g = vec_ref[1:2, :feat]
    ln_b = vec_ref[2:3, :feat]
    b0 = vec_ref[3:4, :two_h0]
    b1 = vec_ref[4:5, :two_h1]
    b_last = vec_ref[5:6, :l_pad]

    # --- shared state encoder: Linear -> LayerNorm -> Tanh (elementwise in f32) ---
    h = jnp.dot(x, w_enc_ref[...], preferred_element_type=jnp.float32) + b_enc
    mu = jnp.mean(h, axis=-1, keepdims=True)
    var = jnp.mean((h - mu) ** 2, axis=-1, keepdims=True)
    h = (h - mu) * jax.lax.rsqrt(var + LN_EPS)
    h = jnp.tanh(h * ln_g + ln_b)

    # --- fused actor|critic hidden layers (bf16 MXU inputs, f32 accumulate) ---
    ac = jnp.tanh(jnp.dot(h.astype(w0_ref.dtype), w0_ref[...],
                          preferred_element_type=jnp.float32) + b0)
    ac = jnp.tanh(jnp.dot(ac.astype(w1_ref.dtype), w1_ref[...],
                          preferred_element_type=jnp.float32) + b1)

    # --- fused last layers (block-diagonal): columns = [means_pre | value | pad] ---
    last = jnp.dot(ac.astype(wl_ref.dtype), wl_ref[...],
                   preferred_element_type=jnp.float32) + b_last

    a = ac[:, :h1]                                   # actor_last_hidden (for gSDE)
    means = jnp.tanh(last[:, :action_dim])           # squash_output=True
    values = last[:, action_dim:action_dim + 1]      # critic: no tanh

    parts = [a, means, values]
    if out_tail:
        parts.append(jnp.zeros((a.shape[0], out_tail), jnp.float32))
    out_ref[...] = jnp.concatenate(parts, axis=-1)   # one lane-dense store


def init_params(key, *, state_dim, num_stacked_frames, obs_feature_dim,
                hidden_dim, action_dim):
    """Deterministic synthetic parameter init (shapes match nn.Module __init__)."""
    in_dim = state_dim * (num_stacked_frames or 1)
    h0, h1 = hidden_dim

    def lin(k, din, dout):
        kw, kb = jax.random.split(k)
        w = jax.random.normal(kw, (din, dout), jnp.float32) / jnp.sqrt(float(din))
        b = 0.1 * jax.random.normal(kb, (1, dout), jnp.float32)
        return w, b

    keys = jax.random.split(key, 8)
    p = {}
    p["w_enc"], p["b_enc"] = lin(keys[0], in_dim, obs_feature_dim)
    p["ln_g"] = 1.0 + 0.1 * jax.random.normal(keys[7], (1, obs_feature_dim), jnp.float32)
    p["ln_b"] = 0.1 * jax.random.normal(jax.random.fold_in(keys[7], 1),
                                        (1, obs_feature_dim), jnp.float32)
    p["w_a0"], p["b_a0"] = lin(keys[1], obs_feature_dim, h0)
    p["w_a1"], p["b_a1"] = lin(keys[2], h0, h1)
    p["w_al"], p["b_al"] = lin(keys[3], h1, action_dim)
    p["w_c0"], p["b_c0"] = lin(keys[4], obs_feature_dim, h0)
    p["w_c1"], p["b_c1"] = lin(keys[5], h0, h1)
    p["w_cl"], p["b_cl"] = lin(keys[6], h1, 1)
    return p


def mlp_actor_critic_forward(x, params, *, tile_n=512):
    """x: (T, B, *feature_dims) float array. Returns (means, values, actor_last_hidden)."""
    T, B = x.shape[0], x.shape[1]
    x2 = x.reshape(T * B, -1).astype(jnp.float32)    # torch x.view(T, B, -1), flattened rows
    N, in_dim = x2.shape

    F = params["w_enc"].shape[1]
    h0 = params["w_a0"].shape[1]
    h1 = params["w_a1"].shape[1]
    A = params["w_al"].shape[1]

    # --- padded / fused sizes ---
    d_pad = _round_up(in_dim, 128)                   # lane-dense input
    l_pad = _round_up(A + 1, 128)                    # fused last-layer output width
    out_w = _round_up(h1 + A + 1, 128)               # packed output width
    out_tail = out_w - (h1 + A + 1)

    if N <= tile_n:
        tn = _round_up(max(N, 1), 16)
        n_pad = tn
    else:
        tn = tile_n
        n_pad = _round_up(N, tn)

    # --- input: pad rows & lanes, bf16 for the MXU / halved HBM traffic ---
    xp = jnp.zeros((n_pad, d_pad), jnp.float32).at[:N, :in_dim].set(x2)
    xp = xp.astype(jnp.bfloat16)

    # --- fused / padded weights (bf16) ---
    w_enc = jnp.zeros((d_pad, F), jnp.float32).at[:in_dim, :].set(params["w_enc"])
    w0 = jnp.concatenate([params["w_a0"], params["w_c0"]], axis=1)        # (F, 2*h0)
    w1 = jnp.zeros((2 * h0, 2 * h1), jnp.float32)
    w1 = w1.at[:h0, :h1].set(params["w_a1"]).at[h0:, h1:].set(params["w_c1"])
    wl = jnp.zeros((2 * h1, l_pad), jnp.float32)
    wl = wl.at[:h1, :A].set(params["w_al"]).at[h1:, A:A + 1].set(params["w_cl"])
    w_enc, w0, w1, wl = (w.astype(jnp.bfloat16) for w in (w_enc, w0, w1, wl))

    # --- all 1-row vectors packed into one f32 slab (8, vec_w) ---
    vec_w = _round_up(max(F, 2 * h0, 2 * h1, l_pad), 128)

    def _row(v, width):
        return jnp.zeros((vec_w,), jnp.float32).at[:width].set(v.reshape(-1))

    vec = jnp.stack([
        _row(params["b_enc"], F),
        _row(params["ln_g"], F),
        _row(params["ln_b"], F),
        _row(jnp.concatenate([params["b_a0"].reshape(-1),
                              params["b_c0"].reshape(-1)]), 2 * h0),
        _row(jnp.concatenate([params["b_a1"].reshape(-1),
                              params["b_c1"].reshape(-1)]), 2 * h1),
        _row(jnp.concatenate([params["b_al"].reshape(-1),
                              params["b_cl"].reshape(-1)]), A + 1),
        jnp.zeros((vec_w,), jnp.float32),
        jnp.zeros((vec_w,), jnp.float32),
    ])

    kernel = functools.partial(mlp_actor_critic_kernel,
                               action_dim=A, out_tail=out_tail)

    packed = pl.pallas_call(
        kernel,
        out_shape=jax.ShapeDtypeStruct((n_pad, out_w), jnp.float32),
        grid=(n_pad // tn,),
        in_specs=[
            pl.BlockSpec((tn, d_pad), lambda i: (i, 0)),       # x: tiled over rows
            pl.BlockSpec(w_enc.shape, lambda i: (0, 0)),       # weights: VMEM-resident
            pl.BlockSpec(w0.shape, lambda i: (0, 0)),
            pl.BlockSpec(w1.shape, lambda i: (0, 0)),
            pl.BlockSpec(wl.shape, lambda i: (0, 0)),
            pl.BlockSpec(vec.shape, lambda i: (0, 0)),
        ],
        out_specs=pl.BlockSpec((tn, out_w), lambda i: (i, 0)),
        compiler_params=pltpu.CompilerParams(
            dimension_semantics=("parallel",),
            vmem_limit_bytes=32 * 1024 * 1024),
    )(xp, w_enc, w0, w1, wl, vec)

    hidden = packed[:N, :h1]
    means = packed[:N, h1:h1 + A]
    values = packed[:N, h1 + A:h1 + A + 1]
    return (means.reshape(T, B, A),
            values.reshape(T, B, 1),
            hidden.reshape(T, B, h1))


def mlp_actor_critic_reference(x, params):
    """Pure-JAX f32 reference matching the torch module semantics."""
    T, B = x.shape[0], x.shape[1]
    x2 = x.reshape(T * B, -1).astype(jnp.float32)
    h = x2 @ params["w_enc"] + params["b_enc"]
    mu = h.mean(-1, keepdims=True)
    var = ((h - mu) ** 2).mean(-1, keepdims=True)
    h = (h - mu) / jnp.sqrt(var + LN_EPS)
    h = jnp.tanh(h * params["ln_g"] + params["ln_b"])
    a = jnp.tanh(h @ params["w_a0"] + params["b_a0"])
    a = jnp.tanh(a @ params["w_a1"] + params["b_a1"])
    means = jnp.tanh(a @ params["w_al"] + params["b_al"])
    c = jnp.tanh(h @ params["w_c0"] + params["b_c0"])
    c = jnp.tanh(c @ params["w_c1"] + params["b_c1"])
    values = c @ params["w_cl"] + params["b_cl"]
    A = params["w_al"].shape[1]
    H1 = params["w_a1"].shape[1]
    return (means.reshape(T, B, A), values.reshape(T, B, 1), a.reshape(T, B, H1))


if __name__ == "__main__":
    # Small, module-consistent shapes.
    T, B = 2, 4                       # (steps, samplers) leading dims kept by x.view(T, B, -1)
    state_dim = 16                    # flattened feature dims: 4 * 4
    num_stacked_frames = 1
    obs_feature_dim = 32
    hidden_dim = (64, 32)
    action_dim = 8

    key = jax.random.PRNGKey(0)
    kx, kp = jax.random.split(key)

    # x has trailing feature dims (4, 4) -> flattened to state_dim=16, like torch x.view.
    x = jax.random.normal(kx, (T, B, 4, 4), jnp.float32)

    params = init_params(
        kp,
        state_dim=state_dim,
        num_stacked_frames=num_stacked_frames,
        obs_feature_dim=obs_feature_dim,
        hidden_dim=hidden_dim,
        action_dim=action_dim,
    )

    means, values, actor_last_hidden = mlp_actor_critic_forward(x, params)
    jax.block_until_ready((means, values, actor_last_hidden))

    assert means.shape == (T, B, action_dim)
    assert values.shape == (T, B, 1)
    assert actor_last_hidden.shape == (T, B, hidden_dim[-1])

    # Numerical sanity check vs. f32 reference (bf16 matmul inputs -> loose tol).
    m_ref, v_ref, h_ref = mlp_actor_critic_reference(x, params)
    max_diff = max(
        float(jnp.max(jnp.abs(means - m_ref))),
        float(jnp.max(jnp.abs(values - v_ref))),
        float(jnp.max(jnp.abs(actor_last_hidden - h_ref))),
    )
    assert max_diff < 5e-2, f"max abs diff {max_diff} too large"

    print("KERNEL_OK")
</pallas_src>

<mosaic_0001>
module attributes {stable_mosaic.version = 11 : i64} {
  func.func @mlp_actor_critic_kernel(%arg0: i32, %arg1: memref<16x128xbf16, #tpu.memory_space<vmem>>, %arg2: memref<128x32xbf16, #tpu.memory_space<vmem>>, %arg3: memref<32x128xbf16, #tpu.memory_space<vmem>>, %arg4: memref<128x64xbf16, #tpu.memory_space<vmem>>, %arg5: memref<64x128xbf16, #tpu.memory_space<vmem>>, %arg6: memref<8x128xf32, #tpu.memory_space<vmem>>, %arg7: memref<16x128xf32, #tpu.memory_space<vmem>>) attributes {dimension_semantics = [#tpu.dimension_semantics<parallel>], iteration_bounds = array<i64: 1>, scalar_prefetch = 0 : i64, scratch_operands = 0 : i64, tpu.core_type = #tpu.core_type<tc>, window_params = [{transform_indices = @transform_0, window_bounds = array<i64: 16, 128>}, {pipeline_mode = #tpu.pipeline_mode<synchronous>, transform_indices = @transform_1, window_bounds = array<i64: 128, 32>}, {pipeline_mode = #tpu.pipeline_mode<synchronous>, transform_indices = @transform_2, window_bounds = array<i64: 32, 128>}, {pipeline_mode = #tpu.pipeline_mode<synchronous>, transform_indices = @transform_3, window_bounds = array<i64: 128, 64>}, {pipeline_mode = #tpu.pipeline_mode<synchronous>, transform_indices = @transform_4, window_bounds = array<i64: 64, 128>}, {pipeline_mode = #tpu.pipeline_mode<synchronous>, transform_indices = @transform_5, window_bounds = array<i64: 8, 128>}, {transform_indices = @transform_6, window_bounds = array<i64: 16, 128>}]} {
    %c0 = arith.constant 0 : index
    %c0_0 = arith.constant 0 : index
    %0 = vector.load %arg1[%c0, %c0_0] : memref<16x128xbf16, #tpu.memory_space<vmem>>, vector<16x128xbf16>
    %c0_1 = arith.constant 0 : index
    %c0_2 = arith.constant 0 : index
    %1 = vector.load %arg6[%c0_1, %c0_2] : memref<8x128xf32, #tpu.memory_space<vmem>>, vector<1x32xf32>
    %c1 = arith.constant 1 : index
    %c0_3 = arith.constant 0 : index
    %2 = vector.load %arg6[%c1, %c0_3] : memref<8x128xf32, #tpu.memory_space<vmem>>, vector<1x32xf32>
    %c2 = arith.constant 2 : index
    %c0_4 = arith.constant 0 : index
    %3 = vector.load %arg6[%c2, %c0_4] : memref<8x128xf32, #tpu.memory_space<vmem>>, vector<1x32xf32>
    %c3 = arith.constant 3 : index
    %c0_5 = arith.constant 0 : index
    %4 = vector.load %arg6[%c3, %c0_5] : memref<8x128xf32, #tpu.memory_space<vmem>>, vector<1x128xf32>
    %c4 = arith.constant 4 : index
    %c0_6 = arith.constant 0 : index
    %5 = vector.load %arg6[%c4, %c0_6] : memref<8x128xf32, #tpu.memory_space<vmem>>, vector<1x64xf32>
    %c5 = arith.constant 5 : index
    %c0_7 = arith.constant 0 : index
    %6 = vector.load %arg6[%c5, %c0_7] : memref<8x128xf32, #tpu.memory_space<vmem>>, vector<1x128xf32>
    %c0_8 = arith.constant 0 : index
    %c0_9 = arith.constant 0 : index
    %7 = vector.load %arg2[%c0_8, %c0_9] : memref<128x32xbf16, #tpu.memory_space<vmem>>, vector<128x32xbf16>
    %cst = arith.constant dense<0.000000e+00> : vector<16x32xf32>
    %8 = tpu.matmul %0, %7, %cst {dimension_numbers = #tpu.dot_dimension_numbers<[1], [0], [0], [1], [0, 0, 1, 1], [], []>} : vector<16x128xbf16>, vector<128x32xbf16>, vector<16x32xf32> -> vector<16x32xf32>
    %9 = vector.broadcast %1 : vector<1x32xf32> to vector<16x32xf32>
    %10 = arith.addf %8, %9 : vector<16x32xf32>
    %cst_10 = arith.constant dense<0.000000e+00> : vector<16xf32>
    %11 = vector.multi_reduction <add>, %10, %cst_10 [1] : vector<16x32xf32> to vector<16xf32>
    %12 = vector.shape_cast %11 : vector<16xf32> to vector<16x1xf32>
    %cst_11 = arith.constant 3.200000e+01 : f32
    %13 = vector.broadcast %cst_11 : f32 to vector<16x1xf32>
    %14 = arith.divf %12, %13 : vector<16x1xf32>
    %15 = vector.broadcast %14 : vector<16x1xf32> to vector<16x32xf32>
    %16 = arith.subf %10, %15 : vector<16x32xf32>
    %17 = arith.mulf %16, %16 : vector<16x32xf32>
    %cst_12 = arith.constant dense<0.000000e+00> : vector<16xf32>
    %18 = vector.multi_reduction <add>, %17, %cst_12 [1] : vector<16x32xf32> to vector<16xf32>
    %19 = vector.shape_cast %18 : vector<16xf32> to vector<16x1xf32>
    %cst_13 = arith.constant 3.200000e+01 : f32
    %20 = vector.broadcast %cst_13 : f32 to vector<16x1xf32>
    %21 = arith.divf %19, %20 : vector<16x1xf32>
    %22 = vector.broadcast %14 : vector<16x1xf32> to vector<16x32xf32>
    %23 = arith.subf %10, %22 : vector<16x32xf32>
    %cst_14 = arith.constant 9.99999974E-6 : f32
    %24 = vector.broadcast %cst_14 : f32 to vector<16x1xf32>
    %25 = arith.addf %21, %24 : vector<16x1xf32>
    %26 = math.rsqrt %25 : vector<16x1xf32>
    %27 = vector.broadcast %26 : vector<16x1xf32> to vector<16x32xf32>
    %28 = arith.mulf %23, %27 : vector<16x32xf32>
    %29 = vector.broadcast %2 : vector<1x32xf32> to vector<16x32xf32>
    %30 = arith.mulf %28, %29 : vector<16x32xf32>
    %31 = vector.broadcast %3 : vector<1x32xf32> to vector<16x32xf32>
    %32 = arith.addf %30, %31 : vector<16x32xf32>
    %33 = math.tanh %32 : vector<16x32xf32>
    %34 = arith.truncf %33 : vector<16x32xf32> to vector<16x32xbf16>
    %c0_15 = arith.constant 0 : index
    %c0_16 = arith.constant 0 : index
    %35 = vector.load %arg3[%c0_15, %c0_16] : memref<32x128xbf16, #tpu.memory_space<vmem>>, vector<32x128xbf16>
    %cst_17 = arith.constant dense<0.000000e+00> : vector<16x128xf32>
    %36 = tpu.matmul %34, %35, %cst_17 {dimension_numbers = #tpu.dot_dimension_numbers<[1], [0], [0], [1], [0, 0, 1, 1], [], []>} : vector<16x32xbf16>, vector<32x128xbf16>, vector<16x128xf32> -> vector<16x128xf32>
    %37 = vector.broadcast %4 : vector<1x128xf32> to vector<16x128xf32>
    %38 = arith.addf %36, %37 : vector<16x128xf32>
    %39 = math.tanh %38 : vector<16x128xf32>
    %40 = arith.truncf %39 : vector<16x128xf32> to vector<16x128xbf16>
    %c0_18 = arith.constant 0 : index
    %c0_19 = arith.constant 0 : index
    %41 = vector.load %arg4[%c0_18, %c0_19] : memref<128x64xbf16, #tpu.memory_space<vmem>>, vector<128x64xbf16>
    %cst_20 = arith.constant dense<0.000000e+00> : vector<16x64xf32>
    %42 = tpu.matmul %40, %41, %cst_20 {dimension_numbers = #tpu.dot_dimension_numbers<[1], [0], [0], [1], [0, 0, 1, 1], [], []>} : vector<16x128xbf16>, vector<128x64xbf16>, vector<16x64xf32> -> vector<16x64xf32>
    %43 = vector.broadcast %5 : vector<1x64xf32> to vector<16x64xf32>
    %44 = arith.addf %42, %43 : vector<16x64xf32>
    %45 = math.tanh %44 : vector<16x64xf32>
    %46 = arith.truncf %45 : vector<16x64xf32> to vector<16x64xbf16>
    %c0_21 = arith.constant 0 : index
    %c0_22 = arith.constant 0 : index
    %47 = vector.load %arg5[%c0_21, %c0_22] : memref<64x128xbf16, #tpu.memory_space<vmem>>, vector<64x128xbf16>
    %cst_23 = arith.constant dense<0.000000e+00> : vector<16x128xf32>
    %48 = tpu.matmul %46, %47, %cst_23 {dimension_numbers = #tpu.dot_dimension_numbers<[1], [0], [0], [1], [0, 0, 1, 1], [], []>} : vector<16x64xbf16>, vector<64x128xbf16>, vector<16x128xf32> -> vector<16x128xf32>
    %49 = vector.broadcast %6 : vector<1x128xf32> to vector<16x128xf32>
    %50 = arith.addf %48, %49 : vector<16x128xf32>
    %51 = vector.extract_strided_slice %45 {offsets = [0, 0], sizes = [16, 32], strides = [1, 1]} : vector<16x64xf32> to vector<16x32xf32>
    %52 = vector.extract_strided_slice %50 {offsets = [0, 0], sizes = [16, 8], strides = [1, 1]} : vector<16x128xf32> to vector<16x8xf32>
    %53 = math.tanh %52 : vector<16x8xf32>
    %54 = vector.extract_strided_slice %50 {offsets = [0, 8], sizes = [16, 1], strides = [1, 1]} : vector<16x128xf32> to vector<16x1xf32>
    %cst_24 = arith.constant 0.000000e+00 : f32
    %55 = vector.broadcast %cst_24 : f32 to vector<16x87xf32>
    %56 = tpu.concatenate %51, %53, %54, %55 in 1 : vector<16x32xf32>, vector<16x8xf32>, vector<16x1xf32>, vector<16x87xf32> -> vector<16x128xf32>
    %c0_25 = arith.constant 0 : index
    %c0_26 = arith.constant 0 : index
    %57 = vector.load %arg7[%c0_25, %c0_26] : memref<16x128xf32, #tpu.memory_space<vmem>>, vector<16x128xf32>
    tpu.vector_store %arg7[%c0_25, %c0_26], %56 {strides = array<i32>} : memref<16x128xf32, #tpu.memory_space<vmem>>, vector<16x128xf32>,
    return
  }
  func.func @transform_0(%arg0: i32) -> (i32, i32) {
    %c0_i32 = arith.constant 0 : i32
    %c0_i32_0 = arith.constant 0 : i32
    return %arg0, %c0_i32 : i32, i32
  }
  func.func @transform_1(%arg0: i32) -> (i32, i32) {
    %c0_i32 = arith.constant 0 : i32
    %c0_i32_0 = arith.constant 0 : i32
    %c0_i32_1 = arith.constant 0 : i32
    return %c0_i32, %c0_i32_0 : i32, i32
  }
  func.func @transform_2(%arg0: i32) -> (i32, i32) {
    %c0_i32 = arith.constant 0 : i32
    %c0_i32_0 = arith.constant 0 : i32
    %c0_i32_1 = arith.constant 0 : i32
    return %c0_i32, %c0_i32_0 : i32, i32
  }
  func.func @transform_3(%arg0: i32) -> (i32, i32) {
    %c0_i32 = arith.constant 0 : i32
    %c0_i32_0 = arith.constant 0 : i32
    %c0_i32_1 = arith.constant 0 : i32
    return %c0_i32, %c0_i32_0 : i32, i32
  }
  func.func @transform_4(%arg0: i32) -> (i32, i32) {
    %c0_i32 = arith.constant 0 : i32
    %c0_i32_0 = arith.constant 0 : i32
    %c0_i32_1 = arith.constant 0 : i32
    return %c0_i32, %c0_i32_0 : i32, i32
  }
  func.func @transform_5(%arg0: i32) -> (i32, i32) {
    %c0_i32 = arith.constant 0 : i32
    %c0_i32_0 = arith.constant 0 : i32
    %c0_i32_1 = arith.constant 0 : i32
    return %c0_i32, %c0_i32_0 : i32, i32
  }
  func.func @transform_6(%arg0: i32) -> (i32, i32) {
    %c0_i32 = arith.constant 0 : i32
    %c0_i32_0 = arith.constant 0 : i32
    return %arg0, %c0_i32 : i32, i32
  }
}

</mosaic_0001>

<llo_original>
// kernel: tpu_custom_call.1
$region0: #{tpu_custom_call.1}
  #allocation0 [shape = 'u32[]', space=smem, size = 0x4, offset = 0x4, fixed_abs, tag = 'smem constant byte address 0x4 - core index']
  #allocation1 [shape = 'u32[144,128]{1,0:T(1,128)}', space=vmem, size = 0x12000, scoped, tag = 'internal scratch']
  %s0 = inlined_call_operand.vmem [shape: bf16[16,128], index: 0, kind: input, shape index: {}]
  %s1 = inlined_call_operand.vmem [shape: bf16[128,32], index: 1, kind: input, shape index: {}]
  %s2 = inlined_call_operand.vmem [shape: bf16[32,128], index: 2, kind: input, shape index: {}]
  %s3 = inlined_call_operand.vmem [shape: bf16[128,64], index: 3, kind: input, shape index: {}]
  %s4 = inlined_call_operand.vmem [shape: bf16[64,128], index: 4, kind: input, shape index: {}]
  %s5 = inlined_call_operand.vmem [shape: f32[8,128], index: 5, kind: input, shape index: {}]
  %s6 = inlined_call_operand.hbm [shape: f32[16,128], index: 6, kind: output, shape index: {}]
  %s7 = sld [smem:[#allocation0]]
  $region34: #{tpu_custom_call.1} parent=0
    _
  %s9 = ssub.s32 1, %s7
  %s10 = scalar_select 0, %s9, %s7
  $region1: #{tpu_custom_call.1} parent=0
    #allocation2 [shape = 'u8[8192]{0}', space=vmem, size = 0x2000, scoped, tag = 'output window, operand 0, single buffered']
    #allocation3 [shape = 's32[1]{0}', space=sflag, size = 0x4, scoped, tag = 'scoped memory for tpu_custom_call.1']
    %11 = vsyncpa [#allocation3], 0
    // Predicated region
    $region2: #{tpu_custom_call.1} parent=1 // pred_check
      _
    $region3: #{tpu_custom_call.1} parent=1 // pred_check_branch
      %13 = sbr.rel (0) target = $region5
    $region4: #{tpu_custom_call.1} parent=1 // pred_region
      _
    $region5: #{tpu_custom_call.1} parent=1 // pred_fallthru
      _
    // Predicated region
    $region6: #{tpu_custom_call.1} parent=1 // pred_check
      _
    $region7: #{tpu_custom_call.1} parent=1 // pred_check_branch
      %15 = sbr.rel (0) target = $region9
    $region8: #{tpu_custom_call.1} parent=1 // pred_region
      _
    $region9: #{tpu_custom_call.1} parent=1 // pred_fallthru
      _
    // Predicated region
    $region10: #{tpu_custom_call.1} parent=1 // pred_check
      _
    $region11: #{tpu_custom_call.1} parent=1 // pred_check_branch
      %17 = sbr.rel (0) target = $region13
    $region12: #{tpu_custom_call.1} parent=1 // pred_region
      _
    $region13: #{tpu_custom_call.1} parent=1 // pred_fallthru
      _
    // Predicated region
    $region14: #{tpu_custom_call.1} parent=1 // pred_check
      _
    $region15: #{tpu_custom_call.1} parent=1 // pred_check_branch
      %19 = sbr.rel (0) target = $region17
    $region16: #{tpu_custom_call.1} parent=1 // pred_region
      _
    $region17: #{tpu_custom_call.1} parent=1 // pred_fallthru
      _
    // Predicated region
    $region18: #{tpu_custom_call.1} parent=1 // pred_check
      _
    $region19: #{tpu_custom_call.1} parent=1 // pred_check_branch
      %21 = sbr.rel (0) target = $region21
    $region20: #{tpu_custom_call.1} parent=1 // pred_region
      _
    $region21: #{tpu_custom_call.1} parent=1 // pred_fallthru
      _
    // Predicated region
    $region22: #{tpu_custom_call.1} parent=1 // pred_check
      _
    $region23: #{tpu_custom_call.1} parent=1 // pred_check_branch
      %23 = sbr.rel (0) target = $region25
    $region24: #{tpu_custom_call.1} parent=1 // pred_region
      _
    $region25: #{tpu_custom_call.1} parent=1 // pred_fallthru
      _
    %v25 = vld [vmem:[%s0] sm:$0xf]
    %v26 = vld [vmem:[%s0 + $0x4] sm:$0xf]
    %v27 = vld [vmem:[%s5] sm:$0x1]
    %v28 = vld [vmem:[%s5 + $0x1] sm:$0x1]
    %v29 = vld [vmem:[%s5 + $0x2] sm:$0x1]
    %v30 = vld [vmem:[%s5 + $0x3] sm:$0x1]
    %v31 = vld [vmem:[%s5 + $0x4] sm:$0x1]
    %v32 = vld [vmem:[%s5 + $0x5] sm:$0x1]
    %v33 = vld [vmem:[%s1] sm:$0xf]
    %v34 = vld [vmem:[%s1 + $0x4] sm:$0xf]
    %v35 = vld [vmem:[%s1 + $0x8] sm:$0xf]
    %v36 = vld [vmem:[%s1 + $0xc] sm:$0xf]
    %v37 = vld [vmem:[%s1 + $0x10] sm:$0xf]
    %v38 = vld [vmem:[%s1 + $0x14] sm:$0xf]
    %v39 = vld [vmem:[%s1 + $0x18] sm:$0xf]
    %v40 = vld [vmem:[%s1 + $0x1c] sm:$0xf]
    %v41 = vld [vmem:[%s1 + $0x20] sm:$0xf]
    %v42 = vld [vmem:[%s1 + $0x24] sm:$0xf]
    %v43 = vld [vmem:[%s1 + $0x28] sm:$0xf]
    %v44 = vld [vmem:[%s1 + $0x2c] sm:$0xf]
    %v45 = vld [vmem:[%s1 + $0x30] sm:$0xf]
    %v46 = vld [vmem:[%s1 + $0x34] sm:$0xf]
    %v47 = vld [vmem:[%s1 + $0x38] sm:$0xf]
    %v48 = vld [vmem:[%s1 + $0x3c] sm:$0xf]
    %v49 = vlaneseq
    %v50 = vshrl.u32 %v49, 7
    %v51 = vsub.s32 0, %v50
    %v52 = vrot.slane %v27, %v51
    %v55 = vunpack.c.l.b16 %v25
    %v56 = vunpack.c.l.b16 %v26
    %v57 = vpack.c.b16 %v56, %v55
    %v75 = vunpack.c.l.b16 %v33
    %v76 = vunpack.c.l.b16 %v34
    %v77 = vunpack.c.l.b16 %v35
    %v78 = vunpack.c.l.b16 %v36
    %v79 = vunpack.c.l.b16 %v37
    %v80 = vunpack.c.l.b16 %v38
    %v81 = vunpack.c.l.b16 %v39
    %v82 = vunpack.c.l.b16 %v40
    %v83 = vunpack.c.l.b16 %v41
    %v84 = vunpack.c.l.b16 %v42
    %v85 = vunpack.c.l.b16 %v43
    %v86 = vunpack.c.l.b16 %v44
    %v87 = vunpack.c.l.b16 %v45
    %v88 = vunpack.c.l.b16 %v46
    %v89 = vunpack.c.l.b16 %v47
    %v90 = vunpack.c.l.b16 %v48
    %v91 = vpack.c.b16 %v76, %v75
    %v92 = vpack.c.b16 %v78, %v77
    %v93 = vpack.c.b16 %v80, %v79
    %v94 = vpack.c.b16 %v82, %v81
    %v95 = vpack.c.b16 %v84, %v83
    %v96 = vpack.c.b16 %v86, %v85
    %v97 = vpack.c.b16 %v88, %v87
    %v98 = vpack.c.b16 %v90, %v89
    %107 = vmatprep.subr.bf16.mxu0 0
    %108 = vmatpush1.bf16.msra.mxu0 %v91
    %109 = vmatprep.subr.bf16.mxu0 0
    %110 = vmatpush1.bf16.msra.mxu0 %v92
    %111 = vmatprep.subr.bf16.mxu0 0
    %112 = vmatpush1.bf16.msra.mxu0 %v93
    %113 = vmatprep.subr.bf16.mxu0 0
    %114 = vmatpush1.bf16.msra.mxu0 %v94
    %115 = vmatprep.subr.bf16.mxu0 0
    %116 = vmatpush1.bf16.msra.mxu0 %v95
    %117 = vmatprep.subr.bf16.mxu0 0
    %118 = vmatpush1.bf16.msra.mxu0 %v96
    %119 = vmatprep.subr.bf16.mxu0 0
    %120 = vmatpush1.bf16.msra.mxu0 %v97
    %121 = vmatprep.subr.bf16.mxu0 0
    %122 = vmatpush1.bf16.msra.mxu0 %v98
    %123 = vmatprep.subr.bf16.mxu0 0
    %124 = vmatpush1.bf16.msra.mxu0 0
    %125 = vmatprep.subr.bf16.mxu0 0
    %126 = vmatpush1.bf16.msra.mxu0 0
    %127 = vmatprep.subr.bf16.mxu0 0
    %128 = vmatpush1.bf16.msra.mxu0 0
    %129 = vmatprep.subr.bf16.mxu0 0
    %130 = vmatpush1.bf16.msra.mxu0 0
    %131 = vmatprep.subr.bf16.mxu0 0
    %132 = vmatpush1.bf16.msra.mxu0 0
    %133 = vmatprep.subr.bf16.mxu0 0
    %134 = vmatpush1.bf16.msra.mxu0 0
    %135 = vmatprep.subr.bf16.mxu0 0
    %136 = vmatpush1.bf16.msra.mxu0 0
    %137 = vmatprep.subr.bf16.mxu0 0
    %138 = vmatpush1.bf16.msra.mxu0 0
    %139 = vmatprep.mubr.bf16.mxu0 0
    %140 = vmatmul.mubr.bf16.gmra.mrb[0].mxu0 %v57
    %v141 = vpop.f32.mrb[0].mxu0
    %v142 = vadd.f32 %v52, %v141
    %v143 = vpop.f32.mrb[0].mxu0
    %v144 = vpop.f32.mrb[0].mxu0
    %v145 = vadd.f32 %v52, %v144
    %v146 = vpop.f32.mrb[0].mxu0
    %147 = vdwg.mxu0
    %vm148 = vcmask 261120
    %v149 = vsel %vm148, %v142, 0.0
    %150 = vadd.xlane.f32.xlu0 %v149
    %v151 = vpop.xlane.xlu0 %150
    %v152 = vsel %vm148, %v145, 0.0
    %153 = vadd.xlane.f32.xlu0 %v152
    %v154 = vpop.xlane.xlu0 %153
    %v155 = vrcp.pop 32.0
    %v156 = vmul.f32 %v151, %v155
    %v157 = vmul.f32 %v154, %v155
    %v158 = vsub.f32 %v142, %v156
    %v159 = vsub.f32 %v145, %v157
    %v160 = vmul.f32 %v158, %v158
    %v161 = vmul.f32 %v159, %v159
    %v162 = vsel %vm148, %v160, 0.0
    %163 = vadd.xlane.f32.xlu0 %v162
    %v164 = vpop.xlane.xlu0 %163
    %v165 = vsel %vm148, %v161, 0.0
    %166 = vadd.xlane.f32.xlu0 %v165
    %v167 = vpop.xlane.xlu0 %166
    %v168 = vmul.f32 %v164, %v155
    %v169 = vmul.f32 %v167, %v155
    %v170 = vadd.f32 %v168, 1e-05
    %v171 = vadd.f32 %v169, 1e-05
    %v172 = vrsqrt.pop %v170
    %v173 = vrsqrt.pop %v171
    %v174 = vmul.f32 %v158, %v172
    %v175 = vmul.f32 %v159, %v173
    %v176 = vlaneseq
    %v177 = vshrl.u32 %v176, 7
    %v178 = vsub.s32 0, %v177
    %v179 = vrot.slane %v28, %v178
    %v180 = vmul.f32 %v174, %v179
    %v181 = vmul.f32 %v175, %v179
    %v182 = vlaneseq
    %v183 = vshrl.u32 %v182, 7
    %v184 = vsub.s32 0, %v183
    %v185 = vrot.slane %v29, %v184
    %v186 = vadd.f32 %v180, %v185
    %v187 = vadd.f32 %v181, %v185
    %v188 = vtanh.pop %v186
    %v189 = vtanh.pop %v187
    %v190 = vpack.c.bf16 %v189, %v188
    %v191 = vld [vmem:[%s2] sm:$0xf]
    %v192 = vld [vmem:[%s2 + $0x4] sm:$0xf]
    %v193 = vld [vmem:[%s2 + $0x8] sm:$0xf]
    %v194 = vld [vmem:[%s2 + $0xc] sm:$0xf]
    %v195 = vlaneseq
    %v196 = vshrl.u32 %v195, 7
    %v197 = vsub.s32 0, %v196
    %v198 = vrot.slane %v30, %v197
    %v203 = vunpack.c.l.b16 %v191
    %v204 = vunpack.c.l.b16 %v192
    %v205 = vunpack.c.l.b16 %v193
    %v206 = vunpack.c.l.b16 %v194
    %v207 = vpack.c.b16 %v204, %v203
    %v208 = vpack.c.b16 %v206, %v205
    %v212 = vsel %vm148, %v190, 0
    %214 = vmatprep.subr.bf16.mxu0 0
    %215 = vmatpush1.bf16.msra.mxu0 %v207
    %216 = vmatprep.subr.bf16.mxu0 0
    %217 = vmatpush1.bf16.msra.mxu0 %v208
    %218 = vmatprep.subr.bf16.mxu0 0
    %219 = vmatpush1.bf16.msra.mxu0 0
    %220 = vmatprep.subr.bf16.mxu0 0
    %221 = vmatpush1.bf16.msra.mxu0 0
    %222 = vmatprep.subr.bf16.mxu0 0
    %223 = vmatpush1.bf16.msra.mxu0 0
    %224 = vmatprep.subr.bf16.mxu0 0
    %225 = vmatpush1.bf16.msra.mxu0 0
    %226 = vmatprep.subr.bf16.mxu0 0
    %227 = vmatpush1.bf16.msra.mxu0 0
    %228 = vmatprep.subr.bf16.mxu0 0
    %229 = vmatpush1.bf16.msra.mxu0 0
    %230 = vmatprep.subr.bf16.mxu0 0
    %231 = vmatpush1.bf16.msra.mxu0 0
    %232 = vmatprep.subr.bf16.mxu0 0
    %233 = vmatpush1.bf16.msra.mxu0 0
    %234 = vmatprep.subr.bf16.mxu0 0
    %235 = vmatpush1.bf16.msra.mxu0 0
    %236 = vmatprep.subr.bf16.mxu0 0
    %237 = vmatpush1.bf16.msra.mxu0 0
    %238 = vmatprep.subr.bf16.mxu0 0
    %239 = vmatpush1.bf16.msra.mxu0 0
    %240 = vmatprep.subr.bf16.mxu0 0
    %241 = vmatpush1.bf16.msra.mxu0 0
    %242 = vmatprep.subr.bf16.mxu0 0
    %243 = vmatpush1.bf16.msra.mxu0 0
    %244 = vmatprep.subr.bf16.mxu0 0
    %245 = vmatpush1.bf16.msra.mxu0 0
    %246 = vmatprep.mubr.bf16.mxu0 0
    %247 = vmatmul.mubr.bf16.gmra.mrb[0].mxu0 %v212
    %v248 = vpop.f32.mrb[0].mxu0
    %v249 = vadd.f32 %v198, %v248
    %v250 = vpop.f32.mrb[0].mxu0
    %v251 = vpop.f32.mrb[0].mxu0
    %v252 = vadd.f32 %v198, %v251
    %v253 = vpop.f32.mrb[0].mxu0
    %254 = vdwg.mxu0
    %v255 = vtanh.pop %v249
    %v256 = vtanh.pop %v252
    %v257 = vpack.c.bf16 %v256, %v255
    %v258 = vld [vmem:[%s3] sm:$0xf]
    %v259 = vld [vmem:[%s3 + $0x4] sm:$0xf]
    %v260 = vld [vmem:[%s3 + $0x8] sm:$0xf]
    %v261 = vld [vmem:[%s3 + $0xc] sm:$0xf]
    %v262 = vld [vmem:[%s3 + $0x10] sm:$0xf]
    %v263 = vld [vmem:[%s3 + $0x14] sm:$0xf]
    %v264 = vld [vmem:[%s3 + $0x18] sm:$0xf]
    %v265 = vld [vmem:[%s3 + $0x1c] sm:$0xf]
    %v266 = vld [vmem:[%s3 + $0x20] sm:$0xf]
    %v267 = vld [vmem:[%s3 + $0x24] sm:$0xf]
    %v268 = vld [vmem:[%s3 + $0x28] sm:$0xf]
    %v269 = vld [vmem:[%s3 + $0x2c] sm:$0xf]
    %v270 = vld [vmem:[%s3 + $0x30] sm:$0xf]
    %v271 = vld [vmem:[%s3 + $0x34] sm:$0xf]
    %v272 = vld [vmem:[%s3 + $0x38] sm:$0xf]
    %v273 = vld [vmem:[%s3 + $0x3c] sm:$0xf]
    %v274 = vlaneseq
    %v275 = vshrl.u32 %v274, 7
    %v276 = vsub.s32 0, %v275
    %v277 = vrot.slane %v31, %v276
    %v294 = vunpack.c.l.b16 %v258
    %v295 = vunpack.c.l.b16 %v259
    %v296 = vunpack.c.l.b16 %v260
    %v297 = vunpack.c.l.b16 %v261
    %v298 = vunpack.c.l.b16 %v262
    %v299 = vunpack.c.l.b16 %v263
    %v300 = vunpack.c.l.b16 %v264
    %v301 = vunpack.c.l.b16 %v265
    %v302 = vunpack.c.l.b16 %v266
    %v303 = vunpack.c.l.b16 %v267
    %v304 = vunpack.c.l.b16 %v268
    %v305 = vunpack.c.l.b16 %v269
    %v306 = vunpack.c.l.b16 %v270
    %v307 = vunpack.c.l.b16 %v271
    %v308 = vunpack.c.l.b16 %v272
    %v309 = vunpack.c.l.b16 %v273
    %v310 = vpack.c.b16 %v295, %v294
    %v311 = vpack.c.b16 %v297, %v296
    %v312 = vpack.c.b16 %v299, %v298
    %v313 = vpack.c.b16 %v301, %v300
    %v314 = vpack.c.b16 %v303, %v302
    %v315 = vpack.c.b16 %v305, %v304
    %v316 = vpack.c.b16 %v307, %v306
    %v317 = vpack.c.b16 %v309, %v308
    %326 = vmatprep.subr.bf16.mxu0 0
    %327 = vmatpush1.bf16.msra.mxu0 %v310
    %328 = vmatprep.subr.bf16.mxu0 0
    %329 = vmatpush1.bf16.msra.mxu0 %v311
    %330 = vmatprep.subr.bf16.mxu0 0
    %331 = vmatpush1.bf16.msra.mxu0 %v312
    %332 = vmatprep.subr.bf16.mxu0 0
    %333 = vmatpush1.bf16.msra.mxu0 %v313
    %334 = vmatprep.subr.bf16.mxu0 0
    %335 = vmatpush1.bf16.msra.mxu0 %v314
    %336 = vmatprep.subr.bf16.mxu0 0
    %337 = vmatpush1.bf16.msra.mxu0 %v315
    %338 = vmatprep.subr.bf16.mxu0 0
    %339 = vmatpush1.bf16.msra.mxu0 %v316
    %340 = vmatprep.subr.bf16.mxu0 0
    %341 = vmatpush1.bf16.msra.mxu0 %v317
    %342 = vmatprep.subr.bf16.mxu0 0
    %343 = vmatpush1.bf16.msra.mxu0 0
    %344 = vmatprep.subr.bf16.mxu0 0
    %345 = vmatpush1.bf16.msra.mxu0 0
    %346 = vmatprep.subr.bf16.mxu0 0
    %347 = vmatpush1.bf16.msra.mxu0 0
    %348 = vmatprep.subr.bf16.mxu0 0
    %349 = vmatpush1.bf16.msra.mxu0 0
    %350 = vmatprep.subr.bf16.mxu0 0
    %351 = vmatpush1.bf16.msra.mxu0 0
    %352 = vmatprep.subr.bf16.mxu0 0
    %353 = vmatpush1.bf16.msra.mxu0 0
    %354 = vmatprep.subr.bf16.mxu0 0
    %355 = vmatpush1.bf16.msra.mxu0 0
    %356 = vmatprep.subr.bf16.mxu0 0
    %357 = vmatpush1.bf16.msra.mxu0 0
    %358 = vmatprep.mubr.bf16.mxu0 0
    %359 = vmatmul.mubr.bf16.gmra.mrb[0].mxu0 %v257
    %v360 = vpop.f32.mrb[0].mxu0
    %v361 = vadd.f32 %v277, %v360
    %v362 = vpop.f32.mrb[0].mxu0
    %v363 = vpop.f32.mrb[0].mxu0
    %v364 = vadd.f32 %v277, %v363
    %v365 = vpop.f32.mrb[0].mxu0
    %366 = vdwg.mxu0
    %v367 = vtanh.pop %v361
    %v368 = vtanh.pop %v364
    %v369 = vpack.c.bf16 %v368, %v367
    %v370 = vld [vmem:[%s4] sm:$0xf]
    %v371 = vld [vmem:[%s4 + $0x4] sm:$0xf]
    %v372 = vld [vmem:[%s4 + $0x8] sm:$0xf]
    %v373 = vld [vmem:[%s4 + $0xc] sm:$0xf]
    %v374 = vld [vmem:[%s4 + $0x10] sm:$0xf]
    %v375 = vld [vmem:[%s4 + $0x14] sm:$0xf]
    %v376 = vld [vmem:[%s4 + $0x18] sm:$0xf]
    %v377 = vld [vmem:[%s4 + $0x1c] sm:$0xf]
    %v378 = vlaneseq
    %v379 = vshrl.u32 %v378, 7
    %v380 = vsub.s32 0, %v379
    %v381 = vrot.slane %v32, %v380
    %v390 = vunpack.c.l.b16 %v370
    %v391 = vunpack.c.l.b16 %v371
    %v392 = vunpack.c.l.b16 %v372
    %v393 = vunpack.c.l.b16 %v373
    %v394 = vunpack.c.l.b16 %v374
    %v395 = vunpack.c.l.b16 %v375
    %v396 = vunpack.c.l.b16 %v376
    %v397 = vunpack.c.l.b16 %v377
    %v398 = vpack.c.b16 %v391, %v390
    %v399 = vpack.c.b16 %v393, %v392
    %v400 = vpack.c.b16 %v395, %v394
    %v401 = vpack.c.b16 %v397, %v396
    %vm406 = vcmask 523264
    %v408 = vsel %vm406, %v369, 0
    %410 = vmatprep.subr.bf16.mxu0 0
    %411 = vmatpush1.bf16.msra.mxu0 %v398
    %412 = vmatprep.subr.bf16.mxu0 0
    %413 = vmatpush1.bf16.msra.mxu0 %v399
    %414 = vmatprep.subr.bf16.mxu0 0
    %415 = vmatpush1.bf16.msra.mxu0 %v400
    %416 = vmatprep.subr.bf16.mxu0 0
    %417 = vmatpush1.bf16.msra.mxu0 %v401
    %418 = vmatprep.subr.bf16.mxu0 0
    %419 = vmatpush1.bf16.msra.mxu0 0
    %420 = vmatprep.subr.bf16.mxu0 0
    %421 = vmatpush1.bf16.msra.mxu0 0
    %422 = vmatprep.subr.bf16.mxu0 0
    %423 = vmatpush1.bf16.msra.mxu0 0
    %424 = vmatprep.subr.bf16.mxu0 0
    %425 = vmatpush1.bf16.msra.mxu0 0
    %426 = vmatprep.subr.bf16.mxu0 0
    %427 = vmatpush1.bf16.msra.mxu0 0
    %428 = vmatprep.subr.bf16.mxu0 0
    %429 = vmatpush1.bf16.msra.mxu0 0
    %430 = vmatprep.subr.bf16.mxu0 0
    %431 = vmatpush1.bf16.msra.mxu0 0
    %432 = vmatprep.subr.bf16.mxu0 0
    %433 = vmatpush1.bf16.msra.mxu0 0
    %434 = vmatprep.subr.bf16.mxu0 0
    %435 = vmatpush1.bf16.msra.mxu0 0
    %436 = vmatprep.subr.bf16.mxu0 0
    %437 = vmatpush1.bf16.msra.mxu0 0
    %438 = vmatprep.subr.bf16.mxu0 0
    %439 = vmatpush1.bf16.msra.mxu0 0
    %440 = vmatprep.subr.bf16.mxu0 0
    %441 = vmatpush1.bf16.msra.mxu0 0
    %442 = vmatprep.mubr.bf16.mxu0 0
    %443 = vmatmul.mubr.bf16.gmra.mrb[0].mxu0 %v408
    %v444 = vpop.f32.mrb[0].mxu0
    %v445 = vadd.f32 %v381, %v444
    %v446 = vpop.f32.mrb[0].mxu0
    %v447 = vpop.f32.mrb[0].mxu0
    %v448 = vadd.f32 %v381, %v447
    %v449 = vpop.f32.mrb[0].mxu0
    %450 = vdwg.mxu0
    %v451 = vtanh.pop %v445
    %v452 = vtanh.pop %v448
    %455 = vrot.lane.b32.xlu0 %v451, 32
    %v456 = vpop.permute.xlu0 %455
    %457 = vrot.lane.b32.xlu0 %v452, 32
    %v458 = vpop.permute.xlu0 %457
    %463 = vrot.lane.b32.xlu0 %v445, 32
    %v464 = vpop.permute.xlu0 %463
    %465 = vrot.lane.b32.xlu0 %v448, 32
    %v466 = vpop.permute.xlu0 %465
    %v469 = vsel %vm148, %v367, %v456
    %v470 = vsel %vm148, %v368, %v458
    %vm471 = vcmask 326656
    %v472 = vsel %vm471, %v469, %v464
    %v473 = vsel %vm471, %v470, %v466
    %vm474 = vcmask 334848
    %v475 = vsel %vm474, %v472, 0.0
    %v476 = vsel %vm474, %v473, 0.0
    %477 = vst [vmem:[#allocation2] sm:$0xff] %v475
    %478 = vst [vmem:[#allocation2 + $0x8] sm:$0xff] %v476
    // Predicated region
    $region26: #{tpu_custom_call.1} parent=1 // pred_check
      _
    $region27: #{tpu_custom_call.1} parent=1 // pred_check_branch
      %480 = sbr.rel (0) target = $region29
    $region28: #{tpu_custom_call.1} parent=1 // pred_region
      %s482 = ssub.s32 256, 256
      %483 = vsyncadd [#allocation3], %s482
      %s484 = sshll.u32 [#allocation2], 4
      %s485 = int_to_ptr.vmem [resolvable:$true] %s484
      %490 = dma.vmem_to_hbm [thread:$0]  %s485, 256, %s6, [#allocation3], 128, 128, 8
    $region29: #{tpu_custom_call.1} parent=1 // pred_fallthru
      _
    // Predicated region
    $region30: #{tpu_custom_call.1} parent=1 // pred_check
      _
    $region31: #{tpu_custom_call.1} parent=1 // pred_check_branch
      %492 = sbr.rel (0) target = $region33
    $region32: #{tpu_custom_call.1} parent=1 // pred_region
      %493 = dma.done [#allocation3], 256
    $region33: #{tpu_custom_call.1} parent=1 // pred_fallthru
      _
    %494 = vsyncpa [#allocation3], 1

</llo_original>
